<compile_context>
chip_gen: v5e
topology: v5e:2x2
jax: 0.10.0
libtpu: 0.0.40
codegen_flags: <defaults>
</compile_context>

<pallas_src>
import math

import jax
import jax.numpy as jnp
import numpy as np
from jax.experimental import pallas as pl
from jax.experimental.pallas import tpu as pltpu


# ----------------------------------------------------------------------------
# Module-init glue (hoisted out of forward per perf review): pre-squeezed,
# pre-cast (maxlen, emb_size) buffer.
# ----------------------------------------------------------------------------
def make_pos_embedding(emb_size: int, maxlen: int = 5000,
                       dtype=jnp.float32) -> jnp.ndarray:
    den = jnp.exp(-jnp.arange(0, emb_size, 2, dtype=jnp.float32)
                  * math.log(10000.0) / emb_size)                      # (emb_size//2,)
    pos = jnp.arange(0, maxlen, dtype=jnp.float32).reshape(maxlen, 1)  # (maxlen, 1)
    angles = pos * den                                                 # (maxlen, E//2)
    pe = jnp.zeros((maxlen, emb_size), dtype=jnp.float32)
    pe = pe.at[:, 0::2].set(jnp.sin(angles))
    pe = pe.at[:, 1::2].set(jnp.cos(angles))
    # Note: pre-casting pe to bf16 here (vs f32 add then cast) is a tiny precision
    # difference vs the PyTorch f32 buffer; halves pe HBM bytes for bf16 activations.
    return pe.astype(dtype)                                            # (maxlen, emb_size)


# ----------------------------------------------------------------------------
# Kernels
# ----------------------------------------------------------------------------
def _make_chunked_add_kernel(batch: int, emb_size: int):
    """E % 128 == 0 path: pe streamed once per S-tile, batch-broadcast in-kernel."""
    def kernel(x_ref, pe_ref, o_ref):
        # x_ref, o_ref: (ts, batch*emb_size) lane-dense tiles.
        # pe_ref:       (ts, emb_size) positional rows (batch dim squeezed).
        pe = pe_ref[...]
        for b in range(batch):                      # static slices of a ref are free
            lo = b * emb_size
            o_ref[:, lo:lo + emb_size] = (
                x_ref[:, lo:lo + emb_size] + pe).astype(o_ref.dtype)
    return kernel


def _full_add_kernel(x_ref, pe_ref, o_ref):
    """Fallback (E % 128 != 0): pe pre-duplicated to (S, B*E); single full-tile add."""
    o_ref[...] = (x_ref[...] + pe_ref[...]).astype(o_ref.dtype)


# ----------------------------------------------------------------------------
# Tile selection
# ----------------------------------------------------------------------------
def _round_up(x: int, m: int) -> int:
    return -(-x // m) * m


def _sublane(dtype) -> int:
    # f32 -> 8 rows/vreg, bf16 -> 16, int8/fp8 -> 32
    return max(8, 32 // jnp.dtype(dtype).itemsize)


def _choose_tile_rows(seq_len: int, row_bytes: int, target_bytes: int,
                      sublane: int, min_steps: int = 4) -> int:
    """Biggest S-tile within the byte budget, sublane-rounded, with a multi-step grid."""
    ts = (target_bytes // max(row_bytes, 1)) // sublane * sublane
    ts = max(sublane, ts)
    # Guarantee >= min_steps grid steps when S is non-trivial: keeps the DMA pipeline
    # overlapped and lets v7x shard the "parallel" axis across both TensorCores.
    if seq_len >= min_steps * sublane:
        ts = min(ts, _round_up(pl.cdiv(seq_len, min_steps), sublane))
    return min(ts, _round_up(seq_len, sublane))


# ----------------------------------------------------------------------------
# Forward (eval mode: dropout = identity)
# ----------------------------------------------------------------------------
def positional_encoding_forward(token_embedding: jnp.ndarray,
                                pos_embedding: jnp.ndarray,
                                *,
                                block_target_bytes: int = 4 << 20,
                                in_place: bool = True) -> jnp.ndarray:
    """token_embedding: (S, B, E); pos_embedding: (maxlen, E) (or (maxlen, 1, E))."""
    S, B, E = token_embedding.shape
    dtype = token_embedding.dtype
    F = B * E

    # Accept the PyTorch-style (maxlen, 1, E) buffer too; squeeze is a free view.
    if pos_embedding.ndim == 3:
        pos_embedding = pos_embedding.reshape(pos_embedding.shape[0],
                                              pos_embedding.shape[-1])
    if pos_embedding.dtype != dtype:
        # Should be pre-cast at init (make_pos_embedding(dtype=...)); fallback only.
        pos_embedding = pos_embedding.astype(dtype)

    x2d = token_embedding.reshape(S, F)            # lane-dense 2D view (free)

    itemsize = jnp.dtype(dtype).itemsize
    sub = _sublane(dtype)
    ts = _choose_tile_rows(S, F * itemsize, block_target_bytes, sub)
    grid = (pl.cdiv(S, ts),)                       # ragged tail handled by block padding

    if E % 128 == 0:
        # Production path: pe streamed as (ts, E) straight out of the maxlen buffer
        # (no per-call slice/cast pass), batch-broadcast in-kernel.
        kernel = _make_chunked_add_kernel(B, E)
        pe_in = pos_embedding                      # (maxlen, E)
        pe_spec = pl.BlockSpec((ts, E), lambda i: (i, 0))
        pe_cols = E
    else:
        # Small-E fallback: duplicate pe across batch once so the kernel does a single
        # full-lane add instead of B masked sub-128-lane chunk stores. pe is only 1/B
        # of the traffic, so this is cheap; no-op for E % 128 == 0 shapes.
        kernel = _full_add_kernel
        pe_in = jnp.tile(pos_embedding[:S], (1, B))  # (S, F)
        pe_spec = pl.BlockSpec((ts, F), lambda i: (i, 0))
        pe_cols = F

    # Double-buffered residency: x-in block + out block + pe block, x2 buffers each.
    resident = 2 * (2 * ts * F + ts * pe_cols) * itemsize
    vmem_limit = None
    if resident > (12 << 20):
        # Big blocks (v7x wants 4-8 MiB x-blocks): raise the scoped-VMEM limit, but
        # stay well under v7x's 64 MiB physical VMEM per TC.
        vmem_limit = int(min(max(resident * 3 // 2, 32 << 20), 48 << 20))

    out2d = pl.pallas_call(
        kernel,
        out_shape=jax.ShapeDtypeStruct((S, F), dtype),
        grid=grid,
        in_specs=[
            pl.BlockSpec((ts, F), lambda i: (i, 0)),   # token embeddings, lane-dense
            pe_spec,                                   # positional rows
        ],
        out_specs=pl.BlockSpec((ts, F), lambda i: (i, 0)),
        # Same-shape read-modify-write: alias input 0 with the output. Donate the
        # embedding at the jit boundary to actually drop the extra allocation.
        input_output_aliases=({0: 0} if in_place else {}),
        compiler_params=pltpu.CompilerParams(
            dimension_semantics=("parallel",),         # shard S-tiles across TCs (v7x)
            vmem_limit_bytes=vmem_limit),
    )(x2d, pe_in)

    return out2d.reshape(S, B, E)


# ----------------------------------------------------------------------------
# Self-test
# ----------------------------------------------------------------------------
if __name__ == "__main__":
    key = jax.random.PRNGKey(0)
    k1, k2, k3 = jax.random.split(key, 3)

    fwd = jax.jit(positional_encoding_forward,
                  static_argnames=("block_target_bytes", "in_place"))

    # 1) Small shape implied by the module spec (E=32 -> lane-fallback path).
    E1, S1, B1, L1 = 32, 8, 2, 64
    x1 = jax.random.normal(k1, (S1, B1, E1), dtype=jnp.float32)
    pe1 = make_pos_embedding(E1, L1)                     # (maxlen, E), f32
    ref1 = x1 + pe1[:S1, None, :]
    out1 = jax.block_until_ready(fwd(x1, pe1))
    np.testing.assert_allclose(np.asarray(out1), np.asarray(ref1),
                               rtol=1e-6, atol=1e-6)

    # 2) Lane-aligned production path: E % 128 == 0, multi-block grid + ragged tail.
    E2, S2, B2, L2 = 128, 250, 8, 512
    x2 = jax.random.normal(k2, (S2, B2, E2), dtype=jnp.float32)
    pe2 = make_pos_embedding(E2, L2)
    ref2 = x2 + pe2[:S2, None, :]
    out2 = jax.block_until_ready(fwd(x2, pe2))
    np.testing.assert_allclose(np.asarray(out2), np.asarray(ref2),
                               rtol=1e-6, atol=1e-6)

    # 3) bf16 path: pre-cast pe buffer + 16-row sublane tiling.
    E3, S3, B3, L3 = 128, 40, 4, 64
    x3 = jax.random.normal(k3, (S3, B3, E3), dtype=jnp.float32).astype(jnp.bfloat16)
    pe3 = make_pos_embedding(E3, L3, dtype=jnp.bfloat16)
    ref3 = x3 + pe3[:S3, None, :]
    out3 = jax.block_until_ready(fwd(x3, pe3))
    np.testing.assert_allclose(np.asarray(out3).astype(np.float32),
                               np.asarray(ref3).astype(np.float32),
                               rtol=2e-2, atol=2e-2)

    print("KERNEL_OK")
</pallas_src>

<mosaic_0001>
module attributes {stable_mosaic.version = 11 : i64} {
  func.func @_full_add_kernel(%arg0: i32, %arg1: memref<8x64xf32, #tpu.memory_space<vmem>>, %arg2: memref<8x64xf32, #tpu.memory_space<vmem>>, %arg3: memref<8x64xf32, #tpu.memory_space<vmem>>) attributes {dimension_semantics = [#tpu.dimension_semantics<parallel>], iteration_bounds = array<i64: 1>, scalar_prefetch = 0 : i64, scratch_operands = 0 : i64, tpu.core_type = #tpu.core_type<tc>, window_params = [{transform_indices = @transform_0, window_bounds = array<i64: 8, 64>}, {transform_indices = @transform_1, window_bounds = array<i64: 8, 64>}, {transform_indices = @transform_2, window_bounds = array<i64: 8, 64>}]} {
    %c0 = arith.constant 0 : index
    %c0_0 = arith.constant 0 : index
    %0 = vector.load %arg1[%c0, %c0_0] : memref<8x64xf32, #tpu.memory_space<vmem>>, vector<8x64xf32>
    %c0_1 = arith.constant 0 : index
    %c0_2 = arith.constant 0 : index
    %1 = vector.load %arg2[%c0_1, %c0_2] : memref<8x64xf32, #tpu.memory_space<vmem>>, vector<8x64xf32>
    %2 = arith.addf %0, %1 : vector<8x64xf32>
    %c0_3 = arith.constant 0 : index
    %c0_4 = arith.constant 0 : index
    %3 = vector.load %arg3[%c0_3, %c0_4] : memref<8x64xf32, #tpu.memory_space<vmem>>, vector<8x64xf32>
    tpu.vector_store %arg3[%c0_3, %c0_4], %2 {strides = array<i32>} : memref<8x64xf32, #tpu.memory_space<vmem>>, vector<8x64xf32>,
    return
  }
  func.func @transform_0(%arg0: i32) -> (i32, i32) {
    %c0_i32 = arith.constant 0 : i32
    %c0_i32_0 = arith.constant 0 : i32
    return %arg0, %c0_i32 : i32, i32
  }
  func.func @transform_1(%arg0: i32) -> (i32, i32) {
    %c0_i32 = arith.constant 0 : i32
    %c0_i32_0 = arith.constant 0 : i32
    return %arg0, %c0_i32 : i32, i32
  }
  func.func @transform_2(%arg0: i32) -> (i32, i32) {
    %c0_i32 = arith.constant 0 : i32
    %c0_i32_0 = arith.constant 0 : i32
    return %arg0, %c0_i32 : i32, i32
  }
}

</mosaic_0001>

<llo_original>
// kernel: tile.9
$region0: #{tile.9}
  %s0 = inlined_call_operand.vmem [shape: f32[8,2,32], index: 0, kind: input, shape index: {}]
  %s1 = inlined_call_operand.vmem [shape: f32[8,64], index: 1, kind: output, shape index: {}]
  $region1: #{tile.9} parent=0
    #allocation0 [shape = 'u8[32768]{0}', space=vmem, size = 0x8000, scoped, tag = 'scoped mem for input reshape']
    %s3 = ssub.s32 4, 1
    %s4 = scalar_lea.vmem %s0, 14
    %v5 = vld [vmem:[%s4] sm:%s3]
    %s6 = scalar_lea.vmem [#allocation0], 56
    %7 = vst [vmem:[%s6] sm:%s3] %v5
    %s8 = scalar_lea.vmem %s0, 12
    %v9 = vld [vmem:[%s8] sm:%s3]
    %s10 = scalar_lea.vmem [#allocation0], 48
    %11 = vst [vmem:[%s10] sm:%s3] %v9
    %s12 = scalar_lea.vmem %s0, 10
    %v13 = vld [vmem:[%s12] sm:%s3]
    %s14 = scalar_lea.vmem [#allocation0], 40
    %15 = vst [vmem:[%s14] sm:%s3] %v13
    %s16 = scalar_lea.vmem %s0, 8
    %v17 = vld [vmem:[%s16] sm:%s3]
    %s18 = scalar_lea.vmem [#allocation0], 32
    %19 = vst [vmem:[%s18] sm:%s3] %v17
    %s20 = scalar_lea.vmem %s0, 6
    %v21 = vld [vmem:[%s20] sm:%s3]
    %s22 = scalar_lea.vmem [#allocation0], 24
    %23 = vst [vmem:[%s22] sm:%s3] %v21
    %s24 = scalar_lea.vmem %s0, 4
    %v25 = vld [vmem:[%s24] sm:%s3]
    %s26 = scalar_lea.vmem [#allocation0], 16
    %27 = vst [vmem:[%s26] sm:%s3] %v25
    %s28 = scalar_lea.vmem %s0, 2
    %v29 = vld [vmem:[%s28] sm:%s3]
    %s30 = scalar_lea.vmem [#allocation0], 8
    %31 = vst [vmem:[%s30] sm:%s3] %v29
    %v32 = vld [vmem:[%s0] sm:%s3]
    %33 = vst [vmem:[#allocation0] sm:%s3] %v32
    %v34 = vld [vmem:[#allocation0] ss:$8 sm:$0xf]
    %v35 = vld [vmem:[#allocation0] ss:$8 sm:$0xf0]
    %vm36 = vcmask 1047556
    %v37 = vsel %vm36, %v35, %v34
    %vm38 = vcmask 261120
    %39 = vst.msk [vmem:[%s1] sm:$0xff] %vm38, %v37
    %s40 = scalar_lea.vmem [#allocation0], 1
    %v41 = vld [vmem:[%s40] ss:$8 sm:$0xf]
    %s42 = scalar_lea.vmem [#allocation0], 1
    %v43 = vld [vmem:[%s42] ss:$8 sm:$0xf0]
    %vm44 = vcmask 1047556
    %v45 = vsel %vm44, %v43, %v41
    %46 = vrot.lane.b32.xlu0 %v45, 32
    %v47 = vpop.permute.xlu0 %46
    %vm48 = vcmask 523520
    %49 = vst.msk [vmem:[%s1] sm:$0xff] %vm48, %v47

// kernel: positional_encoding_forward.1
$region0: #{positional_encoding_forward.1}
  #allocation0 [shape = 'u32[]', space=smem, size = 0x4, offset = 0x4, fixed_abs, tag = 'smem constant byte address 0x4 - core index']
  #allocation1 [shape = 'u32[72,128]{1,0:T(1,128)}', space=vmem, size = 0x9000, scoped, tag = 'internal scratch']
  %s0 = inlined_call_operand.vmem [shape: f32[8,64], index: 0, kind: input, shape index: {}, may-alias: {0,2}]
  %s1 = inlined_call_operand.vmem [shape: f32[8,64], index: 1, kind: input, shape index: {}]
  %s2 = inlined_call_operand.vmem [shape: f32[8,64], index: 2, kind: output, shape index: {}, may-alias: {0,2}]
  %s3 = sld [smem:[#allocation0]]
  $region18: #{positional_encoding_forward.1} parent=0
    _
  %s5 = ssub.s32 1, %s3
  %s6 = scalar_select 0, %s5, %s3
  // Predicated region
  $region2: #{positional_encoding_forward.1} parent=0 // pred_check
    _
  $region3: #{positional_encoding_forward.1} parent=0 // pred_check_branch
    %8 = sbr.rel (0) target = $region5
  $region4: #{positional_encoding_forward.1} parent=0 // pred_region
    _
  $region5: #{positional_encoding_forward.1} parent=0 // pred_fallthru
    _
  // Predicated region
  $region6: #{positional_encoding_forward.1} parent=0 // pred_check
    _
  $region7: #{positional_encoding_forward.1} parent=0 // pred_check_branch
    %10 = sbr.rel (0) target = $region9
  $region8: #{positional_encoding_forward.1} parent=0 // pred_region
    _
  $region9: #{positional_encoding_forward.1} parent=0 // pred_fallthru
    _
  %v11 = vld [vmem:[%s0] sm:$0xff]
  %v12 = vld [vmem:[%s1] sm:$0xff]
  %v13 = vadd.f32 %v11, %v12
  %vm14 = vcmask 523264
  %15 = vst.msk [vmem:[%s2] sm:$0xff] %vm14, %v13
  // Predicated region
  $region10: #{positional_encoding_forward.1} parent=0 // pred_check
    _
  $region11: #{positional_encoding_forward.1} parent=0 // pred_check_branch
    %17 = sbr.rel (0) target = $region13
  $region12: #{positional_encoding_forward.1} parent=0 // pred_region
    _
  $region13: #{positional_encoding_forward.1} parent=0 // pred_fallthru
    _
  // Predicated region
  $region14: #{positional_encoding_forward.1} parent=0 // pred_check
    _
  $region15: #{positional_encoding_forward.1} parent=0 // pred_check_branch
    %19 = sbr.rel (0) target = $region17
  $region16: #{positional_encoding_forward.1} parent=0 // pred_region
    _
  $region17: #{positional_encoding_forward.1} parent=0 // pred_fallthru
    _

</llo_original>
